<compile_context>
chip_gen: v7x
topology: tpu7x:2x2x1
jax: 0.10.0
libtpu: 0.0.40
codegen_flags: <defaults>
</compile_context>

<pallas_src>
import jax
import jax.numpy as jnp
from jax.experimental import pallas as pl
from jax.experimental.pallas import tpu as pltpu


def _add_bias_kernel(x_ref, b_ref, o_ref):
    # x_ref: (TM, S) tile, b_ref: (1, S) resident block (same block every step).
    # b_ref[0, :] -> (S,) row, broadcast over the TM sublanes by the VPU.
    o_ref[...] = x_ref[...] + b_ref[0, :]


def _pick_tm(rows, target):
    """Largest divisor of `rows` <= target, preferring (mult-of-8, even grid >= 4),
    then (mult-of-8, even grid), then any mult-of-8 divisor, then `rows`."""
    target = max(1, min(target, rows))
    divisors = [t for t in range(target, 0, -1) if rows % t == 0]
    for t in divisors:                       # best: even grid with >= 4 steps
        g = rows // t
        if t % 8 == 0 and g % 2 == 0 and g >= 4:
            return t
    for t in divisors:                       # next: any even grid
        g = rows // t
        if t % 8 == 0 and g % 2 == 0:
            return t
    for t in divisors:                       # next: sublane-aligned divisor
        if t % 8 == 0:
            return t
    return rows                              # degenerate fallback: one big tile


def broadcast_add(x, bias, *, tm=768, in_place=False):
    """x: (B, H, S1, S2) f32, bias: (1, 1, 1, S2) f32 -> x + bias (broadcast).

    tm=768 -> grid=6 for the (1,12,384,384) case: even grid (2-TC balance on
    v7x, >=3 steps/core) and enough steps to hide the DMA ramp on v5e, while
    staying near roofline on v6e.  Set in_place=True only if x is donated.
    """
    B, H, S1, S2 = x.shape
    assert bias.shape == (1, 1, 1, S2)
    rows = B * H * S1
    x2 = x.reshape(rows, S2)
    b2 = bias.reshape(1, S2)

    tm = _pick_tm(rows, tm)
    grid = rows // tm

    n_elems = rows * S2
    cost = pl.CostEstimate(
        flops=n_elems,                                          # one add per element
        transcendentals=0,
        bytes_accessed=(2 * n_elems + S2) * x.dtype.itemsize,   # read x + write out + bias
    )

    out2 = pl.pallas_call(
        _add_bias_kernel,
        out_shape=jax.ShapeDtypeStruct((rows, S2), x.dtype),
        grid_spec=pltpu.PrefetchScalarGridSpec(
            num_scalar_prefetch=0,
            grid=(grid,),
            in_specs=[
                pl.BlockSpec((tm, S2), lambda i: (i, 0)),
                pl.BlockSpec((1, S2), lambda i: (0, 0)),   # resident bias block
            ],
            out_specs=pl.BlockSpec((tm, S2), lambda i: (i, 0)),
        ),
        compiler_params=pltpu.CompilerParams(
            dimension_semantics=("parallel",),
        ),
        cost_estimate=cost,
        input_output_aliases=({0: 0} if in_place else {}),
    )(x2, b2)
    return out2.reshape(B, H, S1, S2)


if __name__ == "__main__":
    key = jax.random.PRNGKey(0)
    k1, k2 = jax.random.split(key)

    # Shapes implied by the module's forward:
    #   x457 -> (1, 12, 384, 384), self._tensor_constant20 -> (1, 1, 1, 384)
    x = jax.random.normal(k1, (1, 12, 384, 384), dtype=jnp.float32)
    bias = jax.random.uniform(k2, (1, 1, 1, 384), dtype=jnp.float32)

    out = broadcast_add(x, bias)
    out = jax.block_until_ready(out)

    # correctness check vs plain JAX broadcasting
    ref = x + bias
    assert out.shape == (1, 12, 384, 384)
    assert jnp.allclose(out, ref, atol=1e-6), "mismatch vs reference"

    print("KERNEL_OK")
</pallas_src>

<mosaic_0001>
module attributes {stable_mosaic.version = 11 : i64} {
  func.func @_add_bias_kernel(%arg0: i32, %arg1: memref<768x384xf32, #tpu.memory_space<vmem>>, %arg2: memref<1x384xf32, #tpu.memory_space<vmem>>, %arg3: memref<768x384xf32, #tpu.memory_space<vmem>>) attributes {dimension_semantics = [#tpu.dimension_semantics<parallel>], iteration_bounds = array<i64: 6>, scalar_prefetch = 0 : i64, scratch_operands = 0 : i64, tpu.core_type = #tpu.core_type<tc>, window_params = [{transform_indices = @transform_0, window_bounds = array<i64: 768, 384>}, {pipeline_mode = #tpu.pipeline_mode<synchronous>, transform_indices = @transform_1, window_bounds = array<i64: 1, 384>}, {transform_indices = @transform_2, window_bounds = array<i64: 768, 384>}]} {
    %c0 = arith.constant 0 : index
    %c0_0 = arith.constant 0 : index
    %0 = vector.load %arg1[%c0, %c0_0] : memref<768x384xf32, #tpu.memory_space<vmem>>, vector<768x384xf32>
    %c0_1 = arith.constant 0 : index
    %c0_2 = arith.constant 0 : index
    %1 = vector.load %arg2[%c0_1, %c0_2] : memref<1x384xf32, #tpu.memory_space<vmem>>, vector<1x384xf32>
    %2 = vector.shape_cast %1 : vector<1x384xf32> to vector<384xf32>
    %3 = vector.shape_cast %2 : vector<384xf32> to vector<1x384xf32>
    %4 = vector.broadcast %3 : vector<1x384xf32> to vector<768x384xf32>
    %5 = arith.addf %0, %4 : vector<768x384xf32>
    %c0_3 = arith.constant 0 : index
    %c0_4 = arith.constant 0 : index
    %6 = vector.load %arg3[%c0_3, %c0_4] : memref<768x384xf32, #tpu.memory_space<vmem>>, vector<768x384xf32>
    tpu.vector_store %arg3[%c0_3, %c0_4], %5 {strides = array<i32>} : memref<768x384xf32, #tpu.memory_space<vmem>>, vector<768x384xf32>,
    return
  }
  func.func @transform_0(%arg0: i32) -> (i32, i32) {
    %c0_i32 = arith.constant 0 : i32
    %c0_i32_0 = arith.constant 0 : i32
    return %arg0, %c0_i32 : i32, i32
  }
  func.func @transform_1(%arg0: i32) -> (i32, i32) {
    %c0_i32 = arith.constant 0 : i32
    %c0_i32_0 = arith.constant 0 : i32
    %c0_i32_1 = arith.constant 0 : i32
    return %c0_i32, %c0_i32_0 : i32, i32
  }
  func.func @transform_2(%arg0: i32) -> (i32, i32) {
    %c0_i32 = arith.constant 0 : i32
    %c0_i32_0 = arith.constant 0 : i32
    return %arg0, %c0_i32 : i32, i32
  }
}

</mosaic_0001>

<llo_original>
// kernel: tpu_custom_call.1
$region0: #{tpu_custom_call.1}
  #allocation0 [shape = 'u32[]', space=smem, size = 0x4, offset = 0x4, fixed_abs, tag = 'smem constant byte address 0x4 - core index']
  #allocation1 [shape = 'u32[144,128]{1,0:T(1,128)}', space=vmem, size = 0x12000, scoped, tag = 'internal scratch']
  %s0 = inlined_call_operand.hbm [shape: f32[4608,384], index: 0, kind: input, shape index: {}]
  %s1 = inlined_call_operand.hbm [shape: f32[1,384], index: 1, kind: input, shape index: {}]
  %s2 = inlined_call_operand.hbm [shape: f32[4608,384], index: 2, kind: output, shape index: {}]
  %s3 = sld [smem:[#allocation0]]
  $region49: #{tpu_custom_call.1} parent=0
    _
  %s5 = ssub.s32 1, %s3
  %s6 = scalar_select 0, %s5, %s3
  $region1: #{tpu_custom_call.1} parent=0
    #allocation2 [shape = 'u8[2359296]{0}', space=vmem, size = 0x240000, scoped, tag = 'input window, operand 0']
    #allocation3 [shape = 's32[2]{0}', space=sflag, size = 0x8, scoped, tag = 'scoped memory for tpu_custom_call.1']
    #allocation4 [shape = 's32[2]{0}', space=sflag, size = 0x8, scoped, tag = 'scoped memory for tpu_custom_call.1']
    #allocation5 [shape = 'u8[1536]{0}', space=vmem, size = 0x800, scoped, tag = 'input window, operand 1, single buffered']
    #allocation6 [shape = 's32[1]{0}', space=sflag, size = 0x4, scoped, tag = 'scoped memory for tpu_custom_call.1']
    #allocation7 [shape = 'u8[2359296]{0}', space=vmem, size = 0x240000, scoped, tag = 'output window, operand 0']
    %7 = vsyncpa [#allocation3], 0
    %s8 = scalar_lea.sflag [#allocation3], 1
    %9 = vsyncpa %s8, 0
    %10 = vsyncpa [#allocation6], 0
    %11 = vsyncpa [#allocation4], 0
    %s12 = scalar_lea.sflag [#allocation4], 1
    %13 = vsyncpa %s12, 0
    loop: start=0, step=1, limit=8
    $region2: #{tpu_custom_call.1} parent=1 // loop_pre_header
      _
    $region3: #{tpu_custom_call.1} parent=1 // loop_header
      %s15 = sphi 0, %s19
      %p16 = scmp.ge.s32.totalorder %s15, 8
      %s25 = sphi 0, %s27
      %s28 = sphi 0, %s25
      %s29 = sphi 0, %s28
      %s45 = sphi 0, %s29
      %s49 = sphi 0, %s49
      %s51 = sphi 0, %s49
      %s52 = sphi 0, %s51
      %s66 = sphi 0, %s52
      %s72 = sphi 0, %s74
      %s75 = sphi 0, %s72
      %s76 = sphi 0, %s75
      %s92 = sphi 0, %s76
    $region4: #{tpu_custom_call.1} parent=1 // loop_header_branch
      %18 = sbr.rel (%p16) target = $region8
    $region5: #{tpu_custom_call.1} parent=1 // loop_body
      %s20 = ssub.s32 %s15, 1
      %s21 = ssub.s32 %s15, 2
      %s22 = sadd.s32 %s15, 1
      %s23 = ssub.s32 %s15, %s22
      %p24 = scmp.eq.s32.totalorder %s23, 0
      %s26 = sadd.s32 %s25, 1
      %s27 = scalar_select %p24, %s25, %s26
      %p30 = pneg %p24
      %p31 = scmp.eq.s32.totalorder %s15, 5
      %p32 = por %p30, %p31
      %p33 = scmp.ne.s32.totalorder %s25, %s28
      %p34 = scmp.eq.s32.totalorder %s15, 0
      %p35 = por %p33, %p34
      %p36 = scmp.ne.s32.totalorder %s25, %s28
      %p37 = scmp.eq.s32.totalorder %s20, 5
      %p38 = por %p36, %p37
      %p39 = scmp.ne.s32.totalorder %s28, %s29
      %p40 = scmp.eq.s32.totalorder %s20, 0
      %p41 = por %p39, %p40
      %p42 = scmp.ne.s32.totalorder %s28, %s29
      %p43 = scmp.eq.s32.totalorder %s21, 5
      %p44 = por %p42, %p43
      %p46 = scmp.ne.s32.totalorder %s29, %s45
      %p47 = scmp.eq.s32.totalorder %s21, 0
      %p48 = por %p46, %p47
      %s50 = sadd.s32 %s49, 1
      %p53 = scmp.eq.s32.totalorder %s15, 5
      %p54 = scmp.ne.s32.totalorder %s49, %s51
      %p55 = scmp.eq.s32.totalorder %s15, 0
      %p56 = por %p54, %p55
      %p57 = scmp.ne.s32.totalorder %s49, %s51
      %p58 = scmp.eq.s32.totalorder %s20, 5
      %p59 = por %p57, %p58
      %p60 = scmp.ne.s32.totalorder %s51, %s52
      %p61 = scmp.eq.s32.totalorder %s20, 0
      %p62 = por %p60, %p61
      %p63 = scmp.ne.s32.totalorder %s51, %s52
      %p64 = scmp.eq.s32.totalorder %s21, 5
      %p65 = por %p63, %p64
      %p67 = scmp.ne.s32.totalorder %s52, %s66
      %p68 = scmp.eq.s32.totalorder %s21, 0
      %p69 = por %p67, %p68
      %s70 = ssub.s32 %s15, %s22
      %p71 = scmp.eq.s32.totalorder %s70, 0
      %s73 = sadd.s32 %s72, 1
      %s74 = scalar_select %p71, %s72, %s73
      %p77 = pneg %p71
      %p78 = scmp.eq.s32.totalorder %s15, 5
      %p79 = por %p77, %p78
      %p80 = scmp.ne.s32.totalorder %s72, %s75
      %p81 = scmp.eq.s32.totalorder %s15, 0
      %p82 = por %p80, %p81
      %p83 = scmp.ne.s32.totalorder %s72, %s75
      %p84 = scmp.eq.s32.totalorder %s20, 5
      %p85 = por %p83, %p84
      %p86 = scmp.ne.s32.totalorder %s75, %s76
      %p87 = scmp.eq.s32.totalorder %s20, 0
      %p88 = por %p86, %p87
      %p89 = scmp.ne.s32.totalorder %s75, %s76
      %p90 = scmp.eq.s32.totalorder %s21, 5
      %p91 = por %p89, %p90
      %p93 = scmp.ne.s32.totalorder %s76, %s92
      %p94 = scmp.eq.s32.totalorder %s21, 0
      %p95 = por %p93, %p94
      %p96 = scmp.le.s32.totalorder 1, %s15
      %p97 = scmp.lt.s32.totalorder %s15, 7
      %p98 = pnand %p96, %p97
      %p99 = pneg %p98
      // Predicated region
      $region9: #{tpu_custom_call.1} parent=5 // pred_check
        _
      $region10: #{tpu_custom_call.1} parent=5 // pred_check_branch
        %101 = sbr.rel (%p98) target = $region12
      $region11: #{tpu_custom_call.1} parent=5 // pred_region
        %s102 = ssub.s32 %s15, 1
        // Predicated region
        $region13: #{tpu_custom_call.1} parent=11 // pred_check
          %p103 = pneg %p62
        $region14: #{tpu_custom_call.1} parent=11 // pred_check_branch
          %105 = sbr.rel (%p103) target = $region16
        $region15: #{tpu_custom_call.1} parent=11 // pred_region
          %s107 = ssub.s32 48, 48
          %108 = vsyncadd [#allocation6], %s107
          %s110 = sshll.u32 [#allocation5], 4
          %s111 = int_to_ptr.vmem [resolvable:$true] %s110
          %113 = dma.hbm_to_vmem [thread:$0]  %s1, 48, %s111, [#allocation6]
        $region16: #{tpu_custom_call.1} parent=11 // pred_fallthru
          _
      $region12: #{tpu_custom_call.1} parent=5 // pred_fallthru
        _
      %p114 = scmp.lt.s32.totalorder %s15, 6
      // Predicated region
      $region17: #{tpu_custom_call.1} parent=5 // pred_check
        %p115 = pneg %p114
      $region18: #{tpu_custom_call.1} parent=5 // pred_check_branch
        %117 = sbr.rel (%p115) target = $region20
      $region19: #{tpu_custom_call.1} parent=5 // pred_region
        // Predicated region
        $region21: #{tpu_custom_call.1} parent=19 // pred_check
          %p118 = pneg %p35
        $region22: #{tpu_custom_call.1} parent=19 // pred_check_branch
          %120 = sbr.rel (%p118) target = $region24
        $region23: #{tpu_custom_call.1} parent=19 // pred_region
          %s121 = sand.u32 %s25, 1
          %s122 = scalar_lea.sflag [#allocation3], %s121
          %s123 = sand.u32 %s25, 1
          %s124 = smul.addr %s123, 2304
          %s125 = scalar_lea.vmem [#allocation2], %s124
          %s126 = smul.u32 96, %s15
          %s128 = ssub.s32 36864, 36864
          %129 = vsyncadd %s122, %s128
          %s130 = smul.addr %s126, 3
          %s131 = smul.addr %s130, 128
          %s132 = scalar_lea.hbm %s0, %s131
          %s133 = sshll.u32 %s125, 4
          %s134 = int_to_ptr.vmem [resolvable:$true] %s133
          %139 = dma.hbm_to_vmem [thread:$0]  %s132, 36864, %s134, %s122, 384, 384, 24
        $region24: #{tpu_custom_call.1} parent=19 // pred_fallthru
          _
      $region20: #{tpu_custom_call.1} parent=5 // pred_fallthru
        _
      %p140 = scmp.le.s32.totalorder 1, %s15
      %p141 = scmp.lt.s32.totalorder %s15, 7
      %p142 = pnand %p140, %p141
      %p143 = pneg %p142
      // Predicated region
      $region25: #{tpu_custom_call.1} parent=5 // pred_check
        _
      $region26: #{tpu_custom_call.1} parent=5 // pred_check_branch
        %145 = sbr.rel (%p142) target = $region28
      $region27: #{tpu_custom_call.1} parent=5 // pred_region
        %s146 = ssub.s32 %s15, 1
        %s147 = sand.u32 %s28, 1
        %s148 = scalar_lea.sflag [#allocation3], %s147
        %s149 = sand.u32 %s28, 1
        %s150 = smul.addr %s149, 2304
        %s151 = scalar_lea.vmem [#allocation2], %s150
        // Predicated region
        $region29: #{tpu_custom_call.1} parent=27 // pred_check
          %p152 = pneg %p41
        $region30: #{tpu_custom_call.1} parent=27 // pred_check_branch
          %154 = sbr.rel (%p152) target = $region32
        $region31: #{tpu_custom_call.1} parent=27 // pred_region
          %155 = dma.done %s148, 36864
        $region32: #{tpu_custom_call.1} parent=27 // pred_fallthru
          _
        // Predicated region
        $region33: #{tpu_custom_call.1} parent=27 // pred_check
          %p156 = pneg %p62
        $region34: #{tpu_custom_call.1} parent=27 // pred_check_branch
          %158 = sbr.rel (%p156) target = $region36
        $region35: #{tpu_custom_call.1} parent=27 // pred_region
          %159 = dma.done [#allocation6], 48
        $region36: #{tpu_custom_call.1} parent=27 // pred_fallthru
          _
        %s160 = sand.u32 %s28, 1
        %s161 = scalar_lea.sflag [#allocation3], %s160
        %s162 = sand.u32 %s28, 1
        %s163 = smul.addr %s162, 2304
        %s164 = scalar_lea.vmem [#allocation2], %s163
        %p165 = pneg %p41
        %p166 = pneg %p38
        %p167 = pneg %p62
        %p168 = pneg %p59
        %p169 = pneg %p88
        %p170 = pneg %p85
        %s171 = sand.u32 %s75, 1
        %s172 = scalar_lea.sflag [#allocation4], %s171
        %s173 = sand.u32 %s75, 1
        %s174 = smul.addr %s173, 2304
        %s175 = scalar_lea.vmem [#allocation7], %s174
        %s176 = smul.u32 96, %s20
        %s177 = smul.u32 96, %s20
        %v178 = vld [vmem:[%s151] sm:$0xff]
        %v179 = vld [vmem:[%s151 + $0x8] sm:$0xff]
        %v180 = vld [vmem:[%s151 + $0x10] sm:$0xff]
        %v181 = vld [vmem:[%s151 + $0x18] sm:$0xff]
        %v182 = vld [vmem:[%s151 + $0x20] sm:$0xff]
        %v183 = vld [vmem:[%s151 + $0x28] sm:$0xff]
        %v184 = vld [vmem:[%s151 + $0x30] sm:$0xff]
        %v185 = vld [vmem:[%s151 + $0x38] sm:$0xff]
        %v186 = vld [vmem:[%s151 + $0x40] sm:$0xff]
        %v187 = vld [vmem:[%s151 + $0x48] sm:$0xff]
        %v188 = vld [vmem:[%s151 + $0x50] sm:$0xff]
        %v189 = vld [vmem:[%s151 + $0x58] sm:$0xff]
        %v190 = vld [vmem:[%s151 + $0x60] sm:$0xff]
        %v191 = vld [vmem:[%s151 + $0x68] sm:$0xff]
        %v192 = vld [vmem:[%s151 + $0x70] sm:$0xff]
        %v193 = vld [vmem:[%s151 + $0x78] sm:$0xff]
        %v194 = vld [vmem:[%s151 + $0x80] sm:$0xff]
        %v195 = vld [vmem:[%s151 + $0x88] sm:$0xff]
        %v196 = vld [vmem:[%s151 + $0x90] sm:$0xff]
        %v197 = vld [vmem:[%s151 + $0x98] sm:$0xff]
        %v198 = vld [vmem:[%s151 + $0xa0] sm:$0xff]
        %v199 = vld [vmem:[%s151 + $0xa8] sm:$0xff]
        %v200 = vld [vmem:[%s151 + $0xb0] sm:$0xff]
        %v201 = vld [vmem:[%s151 + $0xb8] sm:$0xff]
        %v202 = vld [vmem:[%s151 + $0xc0] sm:$0xff]
        %v203 = vld [vmem:[%s151 + $0xc8] sm:$0xff]
        %v204 = vld [vmem:[%s151 + $0xd0] sm:$0xff]
        %v205 = vld [vmem:[%s151 + $0xd8] sm:$0xff]
        %v206 = vld [vmem:[%s151 + $0xe0] sm:$0xff]
        %v207 = vld [vmem:[%s151 + $0xe8] sm:$0xff]
        %v208 = vld [vmem:[%s151 + $0xf0] sm:$0xff]
        %v209 = vld [vmem:[%s151 + $0xf8] sm:$0xff]
        %v210 = vld [vmem:[%s151 + $0x100] sm:$0xff]
        %v211 = vld [vmem:[%s151 + $0x108] sm:$0xff]
        %v212 = vld [vmem:[%s151 + $0x110] sm:$0xff]
        %v213 = vld [vmem:[%s151 + $0x118] sm:$0xff]
        %v214 = vld [vmem:[%s151 + $0x120] sm:$0xff]
        %v215 = vld [vmem:[%s151 + $0x128] sm:$0xff]
        %v216 = vld [vmem:[%s151 + $0x130] sm:$0xff]
        %v217 = vld [vmem:[%s151 + $0x138] sm:$0xff]
        %v218 = vld [vmem:[%s151 + $0x140] sm:$0xff]
        %v219 = vld [vmem:[%s151 + $0x148] sm:$0xff]
        %v220 = vld [vmem:[%s151 + $0x150] sm:$0xff]
        %v221 = vld [vmem:[%s151 + $0x158] sm:$0xff]
        %v222 = vld [vmem:[%s151 + $0x160] sm:$0xff]
        %v223 = vld [vmem:[%s151 + $0x168] sm:$0xff]
        %v224 = vld [vmem:[%s151 + $0x170] sm:$0xff]
        %v225 = vld [vmem:[%s151 + $0x178] sm:$0xff]
        %v226 = vld [vmem:[%s151 + $0x180] sm:$0xff]
        %v227 = vld [vmem:[%s151 + $0x188] sm:$0xff]
        %v228 = vld [vmem:[%s151 + $0x190] sm:$0xff]
        %v229 = vld [vmem:[%s151 + $0x198] sm:$0xff]
        %v230 = vld [vmem:[%s151 + $0x1a0] sm:$0xff]
        %v231 = vld [vmem:[%s151 + $0x1a8] sm:$0xff]
        %v232 = vld [vmem:[%s151 + $0x1b0] sm:$0xff]
        %v233 = vld [vmem:[%s151 + $0x1b8] sm:$0xff]
        %v234 = vld [vmem:[%s151 + $0x1c0] sm:$0xff]
        %v235 = vld [vmem:[%s151 + $0x1c8] sm:$0xff]
        %v236 = vld [vmem:[%s151 + $0x1d0] sm:$0xff]
        %v237 = vld [vmem:[%s151 + $0x1d8] sm:$0xff]
        %v238 = vld [vmem:[%s151 + $0x1e0] sm:$0xff]
        %v239 = vld [vmem:[%s151 + $0x1e8] sm:$0xff]
        %v240 = vld [vmem:[%s151 + $0x1f0] sm:$0xff]
        %v241 = vld [vmem:[%s151 + $0x1f8] sm:$0xff]
        %v242 = vld [vmem:[%s151 + $0x200] sm:$0xff]
        %v243 = vld [vmem:[%s151 + $0x208] sm:$0xff]
        %v244 = vld [vmem:[%s151 + $0x210] sm:$0xff]
        %v245 = vld [vmem:[%s151 + $0x218] sm:$0xff]
        %v246 = vld [vmem:[%s151 + $0x220] sm:$0xff]
        %v247 = vld [vmem:[%s151 + $0x228] sm:$0xff]
        %v248 = vld [vmem:[%s151 + $0x230] sm:$0xff]
        %v249 = vld [vmem:[%s151 + $0x238] sm:$0xff]
        %v250 = vld [vmem:[%s151 + $0x240] sm:$0xff]
        %v251 = vld [vmem:[%s151 + $0x248] sm:$0xff]
        %v252 = vld [vmem:[%s151 + $0x250] sm:$0xff]
        %v253 = vld [vmem:[%s151 + $0x258] sm:$0xff]
        %v254 = vld [vmem:[%s151 + $0x260] sm:$0xff]
        %v255 = vld [vmem:[%s151 + $0x268] sm:$0xff]
        %v256 = vld [vmem:[%s151 + $0x270] sm:$0xff]
        %v257 = vld [vmem:[%s151 + $0x278] sm:$0xff]
        %v258 = vld [vmem:[%s151 + $0x280] sm:$0xff]
        %v259 = vld [vmem:[%s151 + $0x288] sm:$0xff]
        %v260 = vld [vmem:[%s151 + $0x290] sm:$0xff]
        %v261 = vld [vmem:[%s151 + $0x298] sm:$0xff]
        %v262 = vld [vmem:[%s151 + $0x2a0] sm:$0xff]
        %v263 = vld [vmem:[%s151 + $0x2a8] sm:$0xff]
        %v264 = vld [vmem:[%s151 + $0x2b0] sm:$0xff]
        %v265 = vld [vmem:[%s151 + $0x2b8] sm:$0xff]
        %v266 = vld [vmem:[%s151 + $0x2c0] sm:$0xff]
        %v267 = vld [vmem:[%s151 + $0x2c8] sm:$0xff]
        %v268 = vld [vmem:[%s151 + $0x2d0] sm:$0xff]
        %v269 = vld [vmem:[%s151 + $0x2d8] sm:$0xff]
        %v270 = vld [vmem:[%s151 + $0x2e0] sm:$0xff]
        %v271 = vld [vmem:[%s151 + $0x2e8] sm:$0xff]
        %v272 = vld [vmem:[%s151 + $0x2f0] sm:$0xff]
        %v273 = vld [vmem:[%s151 + $0x2f8] sm:$0xff]
        %v274 = vld [vmem:[%s151 + $0x300] sm:$0xff]
        %v275 = vld [vmem:[%s151 + $0x308] sm:$0xff]
        %v276 = vld [vmem:[%s151 + $0x310] sm:$0xff]
        %v277 = vld [vmem:[%s151 + $0x318] sm:$0xff]
        %v278 = vld [vmem:[%s151 + $0x320] sm:$0xff]
        %v279 = vld [vmem:[%s151 + $0x328] sm:$0xff]
        %v280 = vld [vmem:[%s151 + $0x330] sm:$0xff]
        %v281 = vld [vmem:[%s151 + $0x338] sm:$0xff]
        %v282 = vld [vmem:[%s151 + $0x340] sm:$0xff]
        %v283 = vld [vmem:[%s151 + $0x348] sm:$0xff]
        %v284 = vld [vmem:[%s151 + $0x350] sm:$0xff]
        %v285 = vld [vmem:[%s151 + $0x358] sm:$0xff]
        %v286 = vld [vmem:[%s151 + $0x360] sm:$0xff]
        %v287 = vld [vmem:[%s151 + $0x368] sm:$0xff]
        %v288 = vld [vmem:[%s151 + $0x370] sm:$0xff]
        %v289 = vld [vmem:[%s151 + $0x378] sm:$0xff]
        %v290 = vld [vmem:[%s151 + $0x380] sm:$0xff]
        %v291 = vld [vmem:[%s151 + $0x388] sm:$0xff]
        %v292 = vld [vmem:[%s151 + $0x390] sm:$0xff]
        %v293 = vld [vmem:[%s151 + $0x398] sm:$0xff]
        %v294 = vld [vmem:[%s151 + $0x3a0] sm:$0xff]
        %v295 = vld [vmem:[%s151 + $0x3a8] sm:$0xff]
        %v296 = vld [vmem:[%s151 + $0x3b0] sm:$0xff]
        %v297 = vld [vmem:[%s151 + $0x3b8] sm:$0xff]
        %v298 = vld [vmem:[%s151 + $0x3c0] sm:$0xff]
        %v299 = vld [vmem:[%s151 + $0x3c8] sm:$0xff]
        %v300 = vld [vmem:[%s151 + $0x3d0] sm:$0xff]
        %v301 = vld [vmem:[%s151 + $0x3d8] sm:$0xff]
        %v302 = vld [vmem:[%s151 + $0x3e0] sm:$0xff]
        %v303 = vld [vmem:[%s151 + $0x3e8] sm:$0xff]
        %v304 = vld [vmem:[%s151 + $0x3f0] sm:$0xff]
        %v305 = vld [vmem:[%s151 + $0x3f8] sm:$0xff]
        %v306 = vld [vmem:[%s151 + $0x400] sm:$0xff]
        %v307 = vld [vmem:[%s151 + $0x408] sm:$0xff]
        %v308 = vld [vmem:[%s151 + $0x410] sm:$0xff]
        %v309 = vld [vmem:[%s151 + $0x418] sm:$0xff]
        %v310 = vld [vmem:[%s151 + $0x420] sm:$0xff]
        %v311 = vld [vmem:[%s151 + $0x428] sm:$0xff]
        %v312 = vld [vmem:[%s151 + $0x430] sm:$0xff]
        %v313 = vld [vmem:[%s151 + $0x438] sm:$0xff]
        %v314 = vld [vmem:[%s151 + $0x440] sm:$0xff]
        %v315 = vld [vmem:[%s151 + $0x448] sm:$0xff]
        %v316 = vld [vmem:[%s151 + $0x450] sm:$0xff]
        %v317 = vld [vmem:[%s151 + $0x458] sm:$0xff]
        %v318 = vld [vmem:[%s151 + $0x460] sm:$0xff]
        %v319 = vld [vmem:[%s151 + $0x468] sm:$0xff]
        %v320 = vld [vmem:[%s151 + $0x470] sm:$0xff]
        %v321 = vld [vmem:[%s151 + $0x478] sm:$0xff]
        %v322 = vld [vmem:[%s151 + $0x480] sm:$0xff]
        %v323 = vld [vmem:[%s151 + $0x488] sm:$0xff]
        %v324 = vld [vmem:[%s151 + $0x490] sm:$0xff]
        %v325 = vld [vmem:[%s151 + $0x498] sm:$0xff]
        %v326 = vld [vmem:[%s151 + $0x4a0] sm:$0xff]
        %v327 = vld [vmem:[%s151 + $0x4a8] sm:$0xff]
        %v328 = vld [vmem:[%s151 + $0x4b0] sm:$0xff]
        %v329 = vld [vmem:[%s151 + $0x4b8] sm:$0xff]
        %v330 = vld [vmem:[%s151 + $0x4c0] sm:$0xff]
        %v331 = vld [vmem:[%s151 + $0x4c8] sm:$0xff]
        %v332 = vld [vmem:[%s151 + $0x4d0] sm:$0xff]
        %v333 = vld [vmem:[%s151 + $0x4d8] sm:$0xff]
        %v334 = vld [vmem:[%s151 + $0x4e0] sm:$0xff]
        %v335 = vld [vmem:[%s151 + $0x4e8] sm:$0xff]
        %v336 = vld [vmem:[%s151 + $0x4f0] sm:$0xff]
        %v337 = vld [vmem:[%s151 + $0x4f8] sm:$0xff]
        %v338 = vld [vmem:[%s151 + $0x500] sm:$0xff]
        %v339 = vld [vmem:[%s151 + $0x508] sm:$0xff]
        %v340 = vld [vmem:[%s151 + $0x510] sm:$0xff]
        %v341 = vld [vmem:[%s151 + $0x518] sm:$0xff]
        %v342 = vld [vmem:[%s151 + $0x520] sm:$0xff]
        %v343 = vld [vmem:[%s151 + $0x528] sm:$0xff]
        %v344 = vld [vmem:[%s151 + $0x530] sm:$0xff]
        %v345 = vld [vmem:[%s151 + $0x538] sm:$0xff]
        %v346 = vld [vmem:[%s151 + $0x540] sm:$0xff]
        %v347 = vld [vmem:[%s151 + $0x548] sm:$0xff]
        %v348 = vld [vmem:[%s151 + $0x550] sm:$0xff]
        %v349 = vld [vmem:[%s151 + $0x558] sm:$0xff]
        %v350 = vld [vmem:[%s151 + $0x560] sm:$0xff]
        %v351 = vld [vmem:[%s151 + $0x568] sm:$0xff]
        %v352 = vld [vmem:[%s151 + $0x570] sm:$0xff]
        %v353 = vld [vmem:[%s151 + $0x578] sm:$0xff]
        %v354 = vld [vmem:[%s151 + $0x580] sm:$0xff]
        %v355 = vld [vmem:[%s151 + $0x588] sm:$0xff]
        %v356 = vld [vmem:[%s151 + $0x590] sm:$0xff]
        %v357 = vld [vmem:[%s151 + $0x598] sm:$0xff]
        %v358 = vld [vmem:[%s151 + $0x5a0] sm:$0xff]
        %v359 = vld [vmem:[%s151 + $0x5a8] sm:$0xff]
        %v360 = vld [vmem:[%s151 + $0x5b0] sm:$0xff]
        %v361 = vld [vmem:[%s151 + $0x5b8] sm:$0xff]
        %v362 = vld [vmem:[%s151 + $0x5c0] sm:$0xff]
        %v363 = vld [vmem:[%s151 + $0x5c8] sm:$0xff]
        %v364 = vld [vmem:[%s151 + $0x5d0] sm:$0xff]
        %v365 = vld [vmem:[%s151 + $0x5d8] sm:$0xff]
        %v366 = vld [vmem:[%s151 + $0x5e0] sm:$0xff]
        %v367 = vld [vmem:[%s151 + $0x5e8] sm:$0xff]
        %v368 = vld [vmem:[%s151 + $0x5f0] sm:$0xff]
        %v369 = vld [vmem:[%s151 + $0x5f8] sm:$0xff]
        %v370 = vld [vmem:[%s151 + $0x600] sm:$0xff]
        %v371 = vld [vmem:[%s151 + $0x608] sm:$0xff]
        %v372 = vld [vmem:[%s151 + $0x610] sm:$0xff]
        %v373 = vld [vmem:[%s151 + $0x618] sm:$0xff]
        %v374 = vld [vmem:[%s151 + $0x620] sm:$0xff]
        %v375 = vld [vmem:[%s151 + $0x628] sm:$0xff]
        %v376 = vld [vmem:[%s151 + $0x630] sm:$0xff]
        %v377 = vld [vmem:[%s151 + $0x638] sm:$0xff]
        %v378 = vld [vmem:[%s151 + $0x640] sm:$0xff]
        %v379 = vld [vmem:[%s151 + $0x648] sm:$0xff]
        %v380 = vld [vmem:[%s151 + $0x650] sm:$0xff]
        %v381 = vld [vmem:[%s151 + $0x658] sm:$0xff]
        %v382 = vld [vmem:[%s151 + $0x660] sm:$0xff]
        %v383 = vld [vmem:[%s151 + $0x668] sm:$0xff]
        %v384 = vld [vmem:[%s151 + $0x670] sm:$0xff]
        %v385 = vld [vmem:[%s151 + $0x678] sm:$0xff]
        %v386 = vld [vmem:[%s151 + $0x680] sm:$0xff]
        %v387 = vld [vmem:[%s151 + $0x688] sm:$0xff]
        %v388 = vld [vmem:[%s151 + $0x690] sm:$0xff]
        %v389 = vld [vmem:[%s151 + $0x698] sm:$0xff]
        %v390 = vld [vmem:[%s151 + $0x6a0] sm:$0xff]
        %v391 = vld [vmem:[%s151 + $0x6a8] sm:$0xff]
        %v392 = vld [vmem:[%s151 + $0x6b0] sm:$0xff]
        %v393 = vld [vmem:[%s151 + $0x6b8] sm:$0xff]
        %v394 = vld [vmem:[%s151 + $0x6c0] sm:$0xff]
        %v395 = vld [vmem:[%s151 + $0x6c8] sm:$0xff]
        %v396 = vld [vmem:[%s151 + $0x6d0] sm:$0xff]
        %v397 = vld [vmem:[%s151 + $0x6d8] sm:$0xff]
        %v398 = vld [vmem:[%s151 + $0x6e0] sm:$0xff]
        %v399 = vld [vmem:[%s151 + $0x6e8] sm:$0xff]
        %v400 = vld [vmem:[%s151 + $0x6f0] sm:$0xff]
        %v401 = vld [vmem:[%s151 + $0x6f8] sm:$0xff]
        %v402 = vld [vmem:[%s151 + $0x700] sm:$0xff]
        %v403 = vld [vmem:[%s151 + $0x708] sm:$0xff]
        %v404 = vld [vmem:[%s151 + $0x710] sm:$0xff]
        %v405 = vld [vmem:[%s151 + $0x718] sm:$0xff]
        %v406 = vld [vmem:[%s151 + $0x720] sm:$0xff]
        %v407 = vld [vmem:[%s151 + $0x728] sm:$0xff]
        %v408 = vld [vmem:[%s151 + $0x730] sm:$0xff]
        %v409 = vld [vmem:[%s151 + $0x738] sm:$0xff]
        %v410 = vld [vmem:[%s151 + $0x740] sm:$0xff]
        %v411 = vld [vmem:[%s151 + $0x748] sm:$0xff]
        %v412 = vld [vmem:[%s151 + $0x750] sm:$0xff]
        %v413 = vld [vmem:[%s151 + $0x758] sm:$0xff]
        %v414 = vld [vmem:[%s151 + $0x760] sm:$0xff]
        %v415 = vld [vmem:[%s151 + $0x768] sm:$0xff]
        %v416 = vld [vmem:[%s151 + $0x770] sm:$0xff]
        %v417 = vld [vmem:[%s151 + $0x778] sm:$0xff]
        %v418 = vld [vmem:[%s151 + $0x780] sm:$0xff]
        %v419 = vld [vmem:[%s151 + $0x788] sm:$0xff]
        %v420 = vld [vmem:[%s151 + $0x790] sm:$0xff]
        %v421 = vld [vmem:[%s151 + $0x798] sm:$0xff]
        %v422 = vld [vmem:[%s151 + $0x7a0] sm:$0xff]
        %v423 = vld [vmem:[%s151 + $0x7a8] sm:$0xff]
        %v424 = vld [vmem:[%s151 + $0x7b0] sm:$0xff]
        %v425 = vld [vmem:[%s151 + $0x7b8] sm:$0xff]
        %v426 = vld [vmem:[%s151 + $0x7c0] sm:$0xff]
        %v427 = vld [vmem:[%s151 + $0x7c8] sm:$0xff]
        %v428 = vld [vmem:[%s151 + $0x7d0] sm:$0xff]
        %v429 = vld [vmem:[%s151 + $0x7d8] sm:$0xff]
        %v430 = vld [vmem:[%s151 + $0x7e0] sm:$0xff]
        %v431 = vld [vmem:[%s151 + $0x7e8] sm:$0xff]
        %v432 = vld [vmem:[%s151 + $0x7f0] sm:$0xff]
        %v433 = vld [vmem:[%s151 + $0x7f8] sm:$0xff]
        %v434 = vld [vmem:[%s151 + $0x800] sm:$0xff]
        %v435 = vld [vmem:[%s151 + $0x808] sm:$0xff]
        %v436 = vld [vmem:[%s151 + $0x810] sm:$0xff]
        %v437 = vld [vmem:[%s151 + $0x818] sm:$0xff]
        %v438 = vld [vmem:[%s151 + $0x820] sm:$0xff]
        %v439 = vld [vmem:[%s151 + $0x828] sm:$0xff]
        %v440 = vld [vmem:[%s151 + $0x830] sm:$0xff]
        %v441 = vld [vmem:[%s151 + $0x838] sm:$0xff]
        %v442 = vld [vmem:[%s151 + $0x840] sm:$0xff]
        %v443 = vld [vmem:[%s151 + $0x848] sm:$0xff]
        %v444 = vld [vmem:[%s151 + $0x850] sm:$0xff]
        %v445 = vld [vmem:[%s151 + $0x858] sm:$0xff]
        %v446 = vld [vmem:[%s151 + $0x860] sm:$0xff]
        %v447 = vld [vmem:[%s151 + $0x868] sm:$0xff]
        %v448 = vld [vmem:[%s151 + $0x870] sm:$0xff]
        %v449 = vld [vmem:[%s151 + $0x878] sm:$0xff]
        %v450 = vld [vmem:[%s151 + $0x880] sm:$0xff]
        %v451 = vld [vmem:[%s151 + $0x888] sm:$0xff]
        %v452 = vld [vmem:[%s151 + $0x890] sm:$0xff]
        %v453 = vld [vmem:[%s151 + $0x898] sm:$0xff]
        %v454 = vld [vmem:[%s151 + $0x8a0] sm:$0xff]
        %v455 = vld [vmem:[%s151 + $0x8a8] sm:$0xff]
        %v456 = vld [vmem:[%s151 + $0x8b0] sm:$0xff]
        %v457 = vld [vmem:[%s151 + $0x8b8] sm:$0xff]
        %v458 = vld [vmem:[%s151 + $0x8c0] sm:$0xff]
        %v459 = vld [vmem:[%s151 + $0x8c8] sm:$0xff]
        %v460 = vld [vmem:[%s151 + $0x8d0] sm:$0xff]
        %v461 = vld [vmem:[%s151 + $0x8d8] sm:$0xff]
        %v462 = vld [vmem:[%s151 + $0x8e0] sm:$0xff]
        %v463 = vld [vmem:[%s151 + $0x8e8] sm:$0xff]
        %v464 = vld [vmem:[%s151 + $0x8f0] sm:$0xff]
        %v465 = vld [vmem:[%s151 + $0x8f8] sm:$0xff]
        %v466 = vld [vmem:[#allocation5] sm:$0x7]
        %v468 = vlaneseq
        %v469 = vshrl.u32 %v468, 7
        %v470 = vsub.s32 0, %v469
        %v471 = vrot.slane %v466, %v470
        %v472 = vlaneseq
        %v473 = vshrl.u32 %v472, 7
        %v474 = vsub.s32 1, %v473
        %v475 = vrot.slane %v466, %v474
        %v476 = vlaneseq
        %v477 = vshrl.u32 %v476, 7
        %v478 = vsub.s32 2, %v477
        %v479 = vrot.slane %v466, %v478
        %v483 = vadd.f32 %v178, %v471
        %v484 = vadd.f32 %v179, %v475
        %v485 = vadd.f32 %v180, %v479
        %v486 = vadd.f32 %v181, %v471
        %v487 = vadd.f32 %v182, %v475
        %v488 = vadd.f32 %v183, %v479
        %v489 = vadd.f32 %v184, %v471
        %v490 = vadd.f32 %v185, %v475
        %v491 = vadd.f32 %v186, %v479
        %v492 = vadd.f32 %v187, %v471
        %v493 = vadd.f32 %v188, %v475
        %v494 = vadd.f32 %v189, %v479
        %v495 = vadd.f32 %v190, %v471
        %v496 = vadd.f32 %v191, %v475
        %v497 = vadd.f32 %v192, %v479
        %v498 = vadd.f32 %v193, %v471
        %v499 = vadd.f32 %v194, %v475
        %v500 = vadd.f32 %v195, %v479
        %v501 = vadd.f32 %v196, %v471
        %v502 = vadd.f32 %v197, %v475
        %v503 = vadd.f32 %v198, %v479
        %v504 = vadd.f32 %v199, %v471
        %v505 = vadd.f32 %v200, %v475
        %v506 = vadd.f32 %v201, %v479
        %v507 = vadd.f32 %v202, %v471
        %v508 = vadd.f32 %v203, %v475
        %v509 = vadd.f32 %v204, %v479
        %v510 = vadd.f32 %v205, %v471
        %v511 = vadd.f32 %v206, %v475
        %v512 = vadd.f32 %v207, %v479
        %v513 = vadd.f32 %v208, %v471
        %v514 = vadd.f32 %v209, %v475
        %v515 = vadd.f32 %v210, %v479
        %v516 = vadd.f32 %v211, %v471
        %v517 = vadd.f32 %v212, %v475
        %v518 = vadd.f32 %v213, %v479
        %v519 = vadd.f32 %v214, %v471
        %v520 = vadd.f32 %v215, %v475
        %v521 = vadd.f32 %v216, %v479
        %v522 = vadd.f32 %v217, %v471
        %v523 = vadd.f32 %v218, %v475
        %v524 = vadd.f32 %v219, %v479
        %v525 = vadd.f32 %v220, %v471
        %v526 = vadd.f32 %v221, %v475
        %v527 = vadd.f32 %v222, %v479
        %v528 = vadd.f32 %v223, %v471
        %v529 = vadd.f32 %v224, %v475
        %v530 = vadd.f32 %v225, %v479
        %v531 = vadd.f32 %v226, %v471
        %v532 = vadd.f32 %v227, %v475
        %v533 = vadd.f32 %v228, %v479
        %v534 = vadd.f32 %v229, %v471
        %v535 = vadd.f32 %v230, %v475
        %v536 = vadd.f32 %v231, %v479
        %v537 = vadd.f32 %v232, %v471
        %v538 = vadd.f32 %v233, %v475
        %v539 = vadd.f32 %v234, %v479
        %v540 = vadd.f32 %v235, %v471
        %v541 = vadd.f32 %v236, %v475
        %v542 = vadd.f32 %v237, %v479
        %v543 = vadd.f32 %v238, %v471
        %v544 = vadd.f32 %v239, %v475
        %v545 = vadd.f32 %v240, %v479
        %v546 = vadd.f32 %v241, %v471
        %v547 = vadd.f32 %v242, %v475
        %v548 = vadd.f32 %v243, %v479
        %v549 = vadd.f32 %v244, %v471
        %v550 = vadd.f32 %v245, %v475
        %v551 = vadd.f32 %v246, %v479
        %v552 = vadd.f32 %v247, %v471
        %v553 = vadd.f32 %v248, %v475
        %v554 = vadd.f32 %v249, %v479
        %v555 = vadd.f32 %v250, %v471
        %v556 = vadd.f32 %v251, %v475
        %v557 = vadd.f32 %v252, %v479
        %v558 = vadd.f32 %v253, %v471
        %v559 = vadd.f32 %v254, %v475
        %v560 = vadd.f32 %v255, %v479
        %v561 = vadd.f32 %v256, %v471
        %v562 = vadd.f32 %v257, %v475
        %v563 = vadd.f32 %v258, %v479
        %v564 = vadd.f32 %v259, %v471
        %v565 = vadd.f32 %v260, %v475
        %v566 = vadd.f32 %v261, %v479
        %v567 = vadd.f32 %v262, %v471
        %v568 = vadd.f32 %v263, %v475
        %v569 = vadd.f32 %v264, %v479
        %v570 = vadd.f32 %v265, %v471
        %v571 = vadd.f32 %v266, %v475
        %v572 = vadd.f32 %v267, %v479
        %v573 = vadd.f32 %v268, %v471
        %v574 = vadd.f32 %v269, %v475
        %v575 = vadd.f32 %v270, %v479
        %v576 = vadd.f32 %v271, %v471
        %v577 = vadd.f32 %v272, %v475
        %v578 = vadd.f32 %v273, %v479
        %v579 = vadd.f32 %v274, %v471
        %v580 = vadd.f32 %v275, %v475
        %v581 = vadd.f32 %v276, %v479
        %v582 = vadd.f32 %v277, %v471
        %v583 = vadd.f32 %v278, %v475
        %v584 = vadd.f32 %v279, %v479
        %v585 = vadd.f32 %v280, %v471
        %v586 = vadd.f32 %v281, %v475
        %v587 = vadd.f32 %v282, %v479
        %v588 = vadd.f32 %v283, %v471
        %v589 = vadd.f32 %v284, %v475
        %v590 = vadd.f32 %v285, %v479
        %v591 = vadd.f32 %v286, %v471
        %v592 = vadd.f32 %v287, %v475
        %v593 = vadd.f32 %v288, %v479
        %v594 = vadd.f32 %v289, %v471
        %v595 = vadd.f32 %v290, %v475
        %v596 = vadd.f32 %v291, %v479
        %v597 = vadd.f32 %v292, %v471
        %v598 = vadd.f32 %v293, %v475
        %v599 = vadd.f32 %v294, %v479
        %v600 = vadd.f32 %v295, %v471
        %v601 = vadd.f32 %v296, %v475
        %v602 = vadd.f32 %v297, %v479
        %v603 = vadd.f32 %v298, %v471
        %v604 = vadd.f32 %v299, %v475
        %v605 = vadd.f32 %v300, %v479
        %v606 = vadd.f32 %v301, %v471
        %v607 = vadd.f32 %v302, %v475
        %v608 = vadd.f32 %v303, %v479
        %v609 = vadd.f32 %v304, %v471
        %v610 = vadd.f32 %v305, %v475
        %v611 = vadd.f32 %v306, %v479
        %v612 = vadd.f32 %v307, %v471
        %v613 = vadd.f32 %v308, %v475
        %v614 = vadd.f32 %v309, %v479
        %v615 = vadd.f32 %v310, %v471
        %v616 = vadd.f32 %v311, %v475
        %v617 = vadd.f32 %v312, %v479
        %v618 = vadd.f32 %v313, %v471
        %v619 = vadd.f32 %v314, %v475
        %v620 = vadd.f32 %v315, %v479
        %v621 = vadd.f32 %v316, %v471
        %v622 = vadd.f32 %v317, %v475
        %v623 = vadd.f32 %v318, %v479
        %v624 = vadd.f32 %v319, %v471
        %v625 = vadd.f32 %v320, %v475
        %v626 = vadd.f32 %v321, %v479
        %v627 = vadd.f32 %v322, %v471
        %v628 = vadd.f32 %v323, %v475
        %v629 = vadd.f32 %v324, %v479
        %v630 = vadd.f32 %v325, %v471
        %v631 = vadd.f32 %v326, %v475
        %v632 = vadd.f32 %v327, %v479
        %v633 = vadd.f32 %v328, %v471
        %v634 = vadd.f32 %v329, %v475
        %v635 = vadd.f32 %v330, %v479
        %v636 = vadd.f32 %v331, %v471
        %v637 = vadd.f32 %v332, %v475
        %v638 = vadd.f32 %v333, %v479
        %v639 = vadd.f32 %v334, %v471
        %v640 = vadd.f32 %v335, %v475
        %v641 = vadd.f32 %v336, %v479
        %v642 = vadd.f32 %v337, %v471
        %v643 = vadd.f32 %v338, %v475
        %v644 = vadd.f32 %v339, %v479
        %v645 = vadd.f32 %v340, %v471
        %v646 = vadd.f32 %v341, %v475
        %v647 = vadd.f32 %v342, %v479
        %v648 = vadd.f32 %v343, %v471
        %v649 = vadd.f32 %v344, %v475
        %v650 = vadd.f32 %v345, %v479
        %v651 = vadd.f32 %v346, %v471
        %v652 = vadd.f32 %v347, %v475
        %v653 = vadd.f32 %v348, %v479
        %v654 = vadd.f32 %v349, %v471
        %v655 = vadd.f32 %v350, %v475
        %v656 = vadd.f32 %v351, %v479
        %v657 = vadd.f32 %v352, %v471
        %v658 = vadd.f32 %v353, %v475
        %v659 = vadd.f32 %v354, %v479
        %v660 = vadd.f32 %v355, %v471
        %v661 = vadd.f32 %v356, %v475
        %v662 = vadd.f32 %v357, %v479
        %v663 = vadd.f32 %v358, %v471
        %v664 = vadd.f32 %v359, %v475
        %v665 = vadd.f32 %v360, %v479
        %v666 = vadd.f32 %v361, %v471
        %v667 = vadd.f32 %v362, %v475
        %v668 = vadd.f32 %v363, %v479
        %v669 = vadd.f32 %v364, %v471
        %v670 = vadd.f32 %v365, %v475
        %v671 = vadd.f32 %v366, %v479
        %v672 = vadd.f32 %v367, %v471
        %v673 = vadd.f32 %v368, %v475
        %v674 = vadd.f32 %v369, %v479
        %v675 = vadd.f32 %v370, %v471
        %v676 = vadd.f32 %v371, %v475
        %v677 = vadd.f32 %v372, %v479
        %v678 = vadd.f32 %v373, %v471
        %v679 = vadd.f32 %v374, %v475
        %v680 = vadd.f32 %v375, %v479
        %v681 = vadd.f32 %v376, %v471
        %v682 = vadd.f32 %v377, %v475
        %v683 = vadd.f32 %v378, %v479
        %v684 = vadd.f32 %v379, %v471
        %v685 = vadd.f32 %v380, %v475
        %v686 = vadd.f32 %v381, %v479
        %v687 = vadd.f32 %v382, %v471
        %v688 = vadd.f32 %v383, %v475
        %v689 = vadd.f32 %v384, %v479
        %v690 = vadd.f32 %v385, %v471
        %v691 = vadd.f32 %v386, %v475
        %v692 = vadd.f32 %v387, %v479
        %v693 = vadd.f32 %v388, %v471
        %v694 = vadd.f32 %v389, %v475
        %v695 = vadd.f32 %v390, %v479
        %v696 = vadd.f32 %v391, %v471
        %v697 = vadd.f32 %v392, %v475
        %v698 = vadd.f32 %v393, %v479
        %v699 = vadd.f32 %v394, %v471
        %v700 = vadd.f32 %v395, %v475
        %v701 = vadd.f32 %v396, %v479
        %v702 = vadd.f32 %v397, %v471
        %v703 = vadd.f32 %v398, %v475
        %v704 = vadd.f32 %v399, %v479
        %v705 = vadd.f32 %v400, %v471
        %v706 = vadd.f32 %v401, %v475
        %v707 = vadd.f32 %v402, %v479
        %v708 = vadd.f32 %v403, %v471
        %v709 = vadd.f32 %v404, %v475
        %v710 = vadd.f32 %v405, %v479
        %v711 = vadd.f32 %v406, %v471
        %v712 = vadd.f32 %v407, %v475
        %v713 = vadd.f32 %v408, %v479
        %v714 = vadd.f32 %v409, %v471
        %v715 = vadd.f32 %v410, %v475
        %v716 = vadd.f32 %v411, %v479
        %v717 = vadd.f32 %v412, %v471
        %v718 = vadd.f32 %v413, %v475
        %v719 = vadd.f32 %v414, %v479
        %v720 = vadd.f32 %v415, %v471
        %v721 = vadd.f32 %v416, %v475
        %v722 = vadd.f32 %v417, %v479
        %v723 = vadd.f32 %v418, %v471
        %v724 = vadd.f32 %v419, %v475
        %v725 = vadd.f32 %v420, %v479
        %v726 = vadd.f32 %v421, %v471
        %v727 = vadd.f32 %v422, %v475
        %v728 = vadd.f32 %v423, %v479
        %v729 = vadd.f32 %v424, %v471
        %v730 = vadd.f32 %v425, %v475
        %v731 = vadd.f32 %v426, %v479
        %v732 = vadd.f32 %v427, %v471
        %v733 = vadd.f32 %v428, %v475
        %v734 = vadd.f32 %v429, %v479
        %v735 = vadd.f32 %v430, %v471
        %v736 = vadd.f32 %v431, %v475
        %v737 = vadd.f32 %v432, %v479
        %v738 = vadd.f32 %v433, %v471
        %v739 = vadd.f32 %v434, %v475
        %v740 = vadd.f32 %v435, %v479
        %v741 = vadd.f32 %v436, %v471
        %v742 = vadd.f32 %v437, %v475
        %v743 = vadd.f32 %v438, %v479
        %v744 = vadd.f32 %v439, %v471
        %v745 = vadd.f32 %v440, %v475
        %v746 = vadd.f32 %v441, %v479
        %v747 = vadd.f32 %v442, %v471
        %v748 = vadd.f32 %v443, %v475
        %v749 = vadd.f32 %v444, %v479
        %v750 = vadd.f32 %v445, %v471
        %v751 = vadd.f32 %v446, %v475
        %v752 = vadd.f32 %v447, %v479
        %v753 = vadd.f32 %v448, %v471
        %v754 = vadd.f32 %v449, %v475
        %v755 = vadd.f32 %v450, %v479
        %v756 = vadd.f32 %v451, %v471
        %v757 = vadd.f32 %v452, %v475
        %v758 = vadd.f32 %v453, %v479
        %v759 = vadd.f32 %v454, %v471
        %v760 = vadd.f32 %v455, %v475
        %v761 = vadd.f32 %v456, %v479
        %v762 = vadd.f32 %v457, %v471
        %v763 = vadd.f32 %v458, %v475
        %v764 = vadd.f32 %v459, %v479
        %v765 = vadd.f32 %v460, %v471
        %v766 = vadd.f32 %v461, %v475
        %v767 = vadd.f32 %v462, %v479
        %v768 = vadd.f32 %v463, %v471
        %v769 = vadd.f32 %v464, %v475
        %v770 = vadd.f32 %v465, %v479
        %771 = vst [vmem:[%s175] sm:$0xff] %v483
        %772 = vst [vmem:[%s175 + $0x8] sm:$0xff] %v484
        %773 = vst [vmem:[%s175 + $0x10] sm:$0xff] %v485
        %774 = vst [vmem:[%s175 + $0x18] sm:$0xff] %v486
        %775 = vst [vmem:[%s175 + $0x20] sm:$0xff] %v487
        %776 = vst [vmem:[%s175 + $0x28] sm:$0xff] %v488
        %777 = vst [vmem:[%s175 + $0x30] sm:$0xff] %v489
        %778 = vst [vmem:[%s175 + $0x38] sm:$0xff] %v490
        %779 = vst [vmem:[%s175 + $0x40] sm:$0xff] %v491
        %780 = vst [vmem:[%s175 + $0x48] sm:$0xff] %v492
        %781 = vst [vmem:[%s175 + $0x50] sm:$0xff] %v493
        %782 = vst [vmem:[%s175 + $0x58] sm:$0xff] %v494
        %783 = vst [vmem:[%s175 + $0x60] sm:$0xff] %v495
        %784 = vst [vmem:[%s175 + $0x68] sm:$0xff] %v496
        %785 = vst [vmem:[%s175 + $0x70] sm:$0xff] %v497
        %786 = vst [vmem:[%s175 + $0x78] sm:$0xff] %v498
        %787 = vst [vmem:[%s175 + $0x80] sm:$0xff] %v499
        %788 = vst [vmem:[%s175 + $0x88] sm:$0xff] %v500
        %789 = vst [vmem:[%s175 + $0x90] sm:$0xff] %v501
        %790 = vst [vmem:[%s175 + $0x98] sm:$0xff] %v502
        %791 = vst [vmem:[%s175 + $0xa0] sm:$0xff] %v503
        %792 = vst [vmem:[%s175 + $0xa8] sm:$0xff] %v504
        %793 = vst [vmem:[%s175 + $0xb0] sm:$0xff] %v505
        %794 = vst [vmem:[%s175 + $0xb8] sm:$0xff] %v506
        %795 = vst [vmem:[%s175 + $0xc0] sm:$0xff] %v507
        %796 = vst [vmem:[%s175 + $0xc8] sm:$0xff] %v508
        %797 = vst [vmem:[%s175 + $0xd0] sm:$0xff] %v509
        %798 = vst [vmem:[%s175 + $0xd8] sm:$0xff] %v510
        %799 = vst [vmem:[%s175 + $0xe0] sm:$0xff] %v511
        %800 = vst [vmem:[%s175 + $0xe8] sm:$0xff] %v512
        %801 = vst [vmem:[%s175 + $0xf0] sm:$0xff] %v513
        %802 = vst [vmem:[%s175 + $0xf8] sm:$0xff] %v514
        %803 = vst [vmem:[%s175 + $0x100] sm:$0xff] %v515
        %804 = vst [vmem:[%s175 + $0x108] sm:$0xff] %v516
        %805 = vst [vmem:[%s175 + $0x110] sm:$0xff] %v517
        %806 = vst [vmem:[%s175 + $0x118] sm:$0xff] %v518
        %807 = vst [vmem:[%s175 + $0x120] sm:$0xff] %v519
        %808 = vst [vmem:[%s175 + $0x128] sm:$0xff] %v520
        %809 = vst [vmem:[%s175 + $0x130] sm:$0xff] %v521
        %810 = vst [vmem:[%s175 + $0x138] sm:$0xff] %v522
        %811 = vst [vmem:[%s175 + $0x140] sm:$0xff] %v523
        %812 = vst [vmem:[%s175 + $0x148] sm:$0xff] %v524
        %813 = vst [vmem:[%s175 + $0x150] sm:$0xff] %v525
        %814 = vst [vmem:[%s175 + $0x158] sm:$0xff] %v526
        %815 = vst [vmem:[%s175 + $0x160] sm:$0xff] %v527
        %816 = vst [vmem:[%s175 + $0x168] sm:$0xff] %v528
        %817 = vst [vmem:[%s175 + $0x170] sm:$0xff] %v529
        %818 = vst [vmem:[%s175 + $0x178] sm:$0xff] %v530
        %819 = vst [vmem:[%s175 + $0x180] sm:$0xff] %v531
        %820 = vst [vmem:[%s175 + $0x188] sm:$0xff] %v532
        %821 = vst [vmem:[%s175 + $0x190] sm:$0xff] %v533
        %822 = vst [vmem:[%s175 + $0x198] sm:$0xff] %v534
        %823 = vst [vmem:[%s175 + $0x1a0] sm:$0xff] %v535
        %824 = vst [vmem:[%s175 + $0x1a8] sm:$0xff] %v536
        %825 = vst [vmem:[%s175 + $0x1b0] sm:$0xff] %v537
        %826 = vst [vmem:[%s175 + $0x1b8] sm:$0xff] %v538
        %827 = vst [vmem:[%s175 + $0x1c0] sm:$0xff] %v539
        %828 = vst [vmem:[%s175 + $0x1c8] sm:$0xff] %v540
        %829 = vst [vmem:[%s175 + $0x1d0] sm:$0xff] %v541
        %830 = vst [vmem:[%s175 + $0x1d8] sm:$0xff] %v542
        %831 = vst [vmem:[%s175 + $0x1e0] sm:$0xff] %v543
        %832 = vst [vmem:[%s175 + $0x1e8] sm:$0xff] %v544
        %833 = vst [vmem:[%s175 + $0x1f0] sm:$0xff] %v545
        %834 = vst [vmem:[%s175 + $0x1f8] sm:$0xff] %v546
        %835 = vst [vmem:[%s175 + $0x200] sm:$0xff] %v547
        %836 = vst [vmem:[%s175 + $0x208] sm:$0xff] %v548
        %837 = vst [vmem:[%s175 + $0x210] sm:$0xff] %v549
        %838 = vst [vmem:[%s175 + $0x218] sm:$0xff] %v550
        %839 = vst [vmem:[%s175 + $0x220] sm:$0xff] %v551
        %840 = vst [vmem:[%s175 + $0x228] sm:$0xff] %v552
        %841 = vst [vmem:[%s175 + $0x230] sm:$0xff] %v553
        %842 = vst [vmem:[%s175 + $0x238] sm:$0xff] %v554
        %843 = vst [vmem:[%s175 + $0x240] sm:$0xff] %v555
        %844 = vst [vmem:[%s175 + $0x248] sm:$0xff] %v556
        %845 = vst [vmem:[%s175 + $0x250] sm:$0xff] %v557
        %846 = vst [vmem:[%s175 + $0x258] sm:$0xff] %v558
        %847 = vst [vmem:[%s175 + $0x260] sm:$0xff] %v559
        %848 = vst [vmem:[%s175 + $0x268] sm:$0xff] %v560
        %849 = vst [vmem:[%s175 + $0x270] sm:$0xff] %v561
        %850 = vst [vmem:[%s175 + $0x278] sm:$0xff] %v562
        %851 = vst [vmem:[%s175 + $0x280] sm:$0xff] %v563
        %852 = vst [vmem:[%s175 + $0x288] sm:$0xff] %v564
        %853 = vst [vmem:[%s175 + $0x290] sm:$0xff] %v565
        %854 = vst [vmem:[%s175 + $0x298] sm:$0xff] %v566
        %855 = vst [vmem:[%s175 + $0x2a0] sm:$0xff] %v567
        %856 = vst [vmem:[%s175 + $0x2a8] sm:$0xff] %v568
        %857 = vst [vmem:[%s175 + $0x2b0] sm:$0xff] %v569
        %858 = vst [vmem:[%s175 + $0x2b8] sm:$0xff] %v570
        %859 = vst [vmem:[%s175 + $0x2c0] sm:$0xff] %v571
        %860 = vst [vmem:[%s175 + $0x2c8] sm:$0xff] %v572
        %861 = vst [vmem:[%s175 + $0x2d0] sm:$0xff] %v573
        %862 = vst [vmem:[%s175 + $0x2d8] sm:$0xff] %v574
        %863 = vst [vmem:[%s175 + $0x2e0] sm:$0xff] %v575
        %864 = vst [vmem:[%s175 + $0x2e8] sm:$0xff] %v576
        %865 = vst [vmem:[%s175 + $0x2f0] sm:$0xff] %v577
        %866 = vst [vmem:[%s175 + $0x2f8] sm:$0xff] %v578
        %867 = vst [vmem:[%s175 + $0x300] sm:$0xff] %v579
        %868 = vst [vmem:[%s175 + $0x308] sm:$0xff] %v580
        %869 = vst [vmem:[%s175 + $0x310] sm:$0xff] %v581
        %870 = vst [vmem:[%s175 + $0x318] sm:$0xff] %v582
        %871 = vst [vmem:[%s175 + $0x320] sm:$0xff] %v583
        %872 = vst [vmem:[%s175 + $0x328] sm:$0xff] %v584
        %873 = vst [vmem:[%s175 + $0x330] sm:$0xff] %v585
        %874 = vst [vmem:[%s175 + $0x338] sm:$0xff] %v586
        %875 = vst [vmem:[%s175 + $0x340] sm:$0xff] %v587
        %876 = vst [vmem:[%s175 + $0x348] sm:$0xff] %v588
        %877 = vst [vmem:[%s175 + $0x350] sm:$0xff] %v589
        %878 = vst [vmem:[%s175 + $0x358] sm:$0xff] %v590
        %879 = vst [vmem:[%s175 + $0x360] sm:$0xff] %v591
        %880 = vst [vmem:[%s175 + $0x368] sm:$0xff] %v592
        %881 = vst [vmem:[%s175 + $0x370] sm:$0xff] %v593
        %882 = vst [vmem:[%s175 + $0x378] sm:$0xff] %v594
        %883 = vst [vmem:[%s175 + $0x380] sm:$0xff] %v595
        %884 = vst [vmem:[%s175 + $0x388] sm:$0xff] %v596
        %885 = vst [vmem:[%s175 + $0x390] sm:$0xff] %v597
        %886 = vst [vmem:[%s175 + $0x398] sm:$0xff] %v598
        %887 = vst [vmem:[%s175 + $0x3a0] sm:$0xff] %v599
        %888 = vst [vmem:[%s175 + $0x3a8] sm:$0xff] %v600
        %889 = vst [vmem:[%s175 + $0x3b0] sm:$0xff] %v601
        %890 = vst [vmem:[%s175 + $0x3b8] sm:$0xff] %v602
        %891 = vst [vmem:[%s175 + $0x3c0] sm:$0xff] %v603
        %892 = vst [vmem:[%s175 + $0x3c8] sm:$0xff] %v604
        %893 = vst [vmem:[%s175 + $0x3d0] sm:$0xff] %v605
        %894 = vst [vmem:[%s175 + $0x3d8] sm:$0xff] %v606
        %895 = vst [vmem:[%s175 + $0x3e0] sm:$0xff] %v607
        %896 = vst [vmem:[%s175 + $0x3e8] sm:$0xff] %v608
        %897 = vst [vmem:[%s175 + $0x3f0] sm:$0xff] %v609
        %898 = vst [vmem:[%s175 + $0x3f8] sm:$0xff] %v610
        %899 = vst [vmem:[%s175 + $0x400] sm:$0xff] %v611
        %900 = vst [vmem:[%s175 + $0x408] sm:$0xff] %v612
        %901 = vst [vmem:[%s175 + $0x410] sm:$0xff] %v613
        %902 = vst [vmem:[%s175 + $0x418] sm:$0xff] %v614
        %903 = vst [vmem:[%s175 + $0x420] sm:$0xff] %v615
        %904 = vst [vmem:[%s175 + $0x428] sm:$0xff] %v616
        %905 = vst [vmem:[%s175 + $0x430] sm:$0xff] %v617
        %906 = vst [vmem:[%s175 + $0x438] sm:$0xff] %v618
        %907 = vst [vmem:[%s175 + $0x440] sm:$0xff] %v619
        %908 = vst [vmem:[%s175 + $0x448] sm:$0xff] %v620
        %909 = vst [vmem:[%s175 + $0x450] sm:$0xff] %v621
        %910 = vst [vmem:[%s175 + $0x458] sm:$0xff] %v622
        %911 = vst [vmem:[%s175 + $0x460] sm:$0xff] %v623
        %912 = vst [vmem:[%s175 + $0x468] sm:$0xff] %v624
        %913 = vst [vmem:[%s175 + $0x470] sm:$0xff] %v625
        %914 = vst [vmem:[%s175 + $0x478] sm:$0xff] %v626
        %915 = vst [vmem:[%s175 + $0x480] sm:$0xff] %v627
        %916 = vst [vmem:[%s175 + $0x488] sm:$0xff] %v628
        %917 = vst [vmem:[%s175 + $0x490] sm:$0xff] %v629
        %918 = vst [vmem:[%s175 + $0x498] sm:$0xff] %v630
        %919 = vst [vmem:[%s175 + $0x4a0] sm:$0xff] %v631
        %920 = vst [vmem:[%s175 + $0x4a8] sm:$0xff] %v632
        %921 = vst [vmem:[%s175 + $0x4b0] sm:$0xff] %v633
        %922 = vst [vmem:[%s175 + $0x4b8] sm:$0xff] %v634
        %923 = vst [vmem:[%s175 + $0x4c0] sm:$0xff] %v635
        %924 = vst [vmem:[%s175 + $0x4c8] sm:$0xff] %v636
        %925 = vst [vmem:[%s175 + $0x4d0] sm:$0xff] %v637
        %926 = vst [vmem:[%s175 + $0x4d8] sm:$0xff] %v638
        %927 = vst [vmem:[%s175 + $0x4e0] sm:$0xff] %v639
        %928 = vst [vmem:[%s175 + $0x4e8] sm:$0xff] %v640
        %929 = vst [vmem:[%s175 + $0x4f0] sm:$0xff] %v641
        %930 = vst [vmem:[%s175 + $0x4f8] sm:$0xff] %v642
        %931 = vst [vmem:[%s175 + $0x500] sm:$0xff] %v643
        %932 = vst [vmem:[%s175 + $0x508] sm:$0xff] %v644
        %933 = vst [vmem:[%s175 + $0x510] sm:$0xff] %v645
        %934 = vst [vmem:[%s175 + $0x518] sm:$0xff] %v646
        %935 = vst [vmem:[%s175 + $0x520] sm:$0xff] %v647
        %936 = vst [vmem:[%s175 + $0x528] sm:$0xff] %v648
        %937 = vst [vmem:[%s175 + $0x530] sm:$0xff] %v649
        %938 = vst [vmem:[%s175 + $0x538] sm:$0xff] %v650
        %939 = vst [vmem:[%s175 + $0x540] sm:$0xff] %v651
        %940 = vst [vmem:[%s175 + $0x548] sm:$0xff] %v652
        %941 = vst [vmem:[%s175 + $0x550] sm:$0xff] %v653
        %942 = vst [vmem:[%s175 + $0x558] sm:$0xff] %v654
        %943 = vst [vmem:[%s175 + $0x560] sm:$0xff] %v655
        %944 = vst [vmem:[%s175 + $0x568] sm:$0xff] %v656
        %945 = vst [vmem:[%s175 + $0x570] sm:$0xff] %v657
        %946 = vst [vmem:[%s175 + $0x578] sm:$0xff] %v658
        %947 = vst [vmem:[%s175 + $0x580] sm:$0xff] %v659
        %948 = vst [vmem:[%s175 + $0x588] sm:$0xff] %v660
        %949 = vst [vmem:[%s175 + $0x590] sm:$0xff] %v661
        %950 = vst [vmem:[%s175 + $0x598] sm:$0xff] %v662
        %951 = vst [vmem:[%s175 + $0x5a0] sm:$0xff] %v663
        %952 = vst [vmem:[%s175 + $0x5a8] sm:$0xff] %v664
        %953 = vst [vmem:[%s175 + $0x5b0] sm:$0xff] %v665
        %954 = vst [vmem:[%s175 + $0x5b8] sm:$0xff] %v666
        %955 = vst [vmem:[%s175 + $0x5c0] sm:$0xff] %v667
        %956 = vst [vmem:[%s175 + $0x5c8] sm:$0xff] %v668
        %957 = vst [vmem:[%s175 + $0x5d0] sm:$0xff] %v669
        %958 = vst [vmem:[%s175 + $0x5d8] sm:$0xff] %v670
        %959 = vst [vmem:[%s175 + $0x5e0] sm:$0xff] %v671
        %960 = vst [vmem:[%s175 + $0x5e8] sm:$0xff] %v672
        %961 = vst [vmem:[%s175 + $0x5f0] sm:$0xff] %v673
        %962 = vst [vmem:[%s175 + $0x5f8] sm:$0xff] %v674
        %963 = vst [vmem:[%s175 + $0x600] sm:$0xff] %v675
        %964 = vst [vmem:[%s175 + $0x608] sm:$0xff] %v676
        %965 = vst [vmem:[%s175 + $0x610] sm:$0xff] %v677
        %966 = vst [vmem:[%s175 + $0x618] sm:$0xff] %v678
        %967 = vst [vmem:[%s175 + $0x620] sm:$0xff] %v679
        %968 = vst [vmem:[%s175 + $0x628] sm:$0xff] %v680
        %969 = vst [vmem:[%s175 + $0x630] sm:$0xff] %v681
        %970 = vst [vmem:[%s175 + $0x638] sm:$0xff] %v682
        %971 = vst [vmem:[%s175 + $0x640] sm:$0xff] %v683
        %972 = vst [vmem:[%s175 + $0x648] sm:$0xff] %v684
        %973 = vst [vmem:[%s175 + $0x650] sm:$0xff] %v685
        %974 = vst [vmem:[%s175 + $0x658] sm:$0xff] %v686
        %975 = vst [vmem:[%s175 + $0x660] sm:$0xff] %v687
        %976 = vst [vmem:[%s175 + $0x668] sm:$0xff] %v688
        %977 = vst [vmem:[%s175 + $0x670] sm:$0xff] %v689
        %978 = vst [vmem:[%s175 + $0x678] sm:$0xff] %v690
        %979 = vst [vmem:[%s175 + $0x680] sm:$0xff] %v691
        %980 = vst [vmem:[%s175 + $0x688] sm:$0xff] %v692
        %981 = vst [vmem:[%s175 + $0x690] sm:$0xff] %v693
        %982 = vst [vmem:[%s175 + $0x698] sm:$0xff] %v694
        %983 = vst [vmem:[%s175 + $0x6a0] sm:$0xff] %v695
        %984 = vst [vmem:[%s175 + $0x6a8] sm:$0xff] %v696
        %985 = vst [vmem:[%s175 + $0x6b0] sm:$0xff] %v697
        %986 = vst [vmem:[%s175 + $0x6b8] sm:$0xff] %v698
        %987 = vst [vmem:[%s175 + $0x6c0] sm:$0xff] %v699
        %988 = vst [vmem:[%s175 + $0x6c8] sm:$0xff] %v700
        %989 = vst [vmem:[%s175 + $0x6d0] sm:$0xff] %v701
        %990 = vst [vmem:[%s175 + $0x6d8] sm:$0xff] %v702
        %991 = vst [vmem:[%s175 + $0x6e0] sm:$0xff] %v703
        %992 = vst [vmem:[%s175 + $0x6e8] sm:$0xff] %v704
        %993 = vst [vmem:[%s175 + $0x6f0] sm:$0xff] %v705
        %994 = vst [vmem:[%s175 + $0x6f8] sm:$0xff] %v706
        %995 = vst [vmem:[%s175 + $0x700] sm:$0xff] %v707
        %996 = vst [vmem:[%s175 + $0x708] sm:$0xff] %v708
        %997 = vst [vmem:[%s175 + $0x710] sm:$0xff] %v709
        %998 = vst [vmem:[%s175 + $0x718] sm:$0xff] %v710
        %999 = vst [vmem:[%s175 + $0x720] sm:$0xff] %v711
        %1000 = vst [vmem:[%s175 + $0x728] sm:$0xff] %v712
        %1001 = vst [vmem:[%s175 + $0x730] sm:$0xff] %v713
        %1002 = vst [vmem:[%s175 + $0x738] sm:$0xff] %v714
        %1003 = vst [vmem:[%s175 + $0x740] sm:$0xff] %v715
        %1004 = vst [vmem:[%s175 + $0x748] sm:$0xff] %v716
        %1005 = vst [vmem:[%s175 + $0x750] sm:$0xff] %v717
        %1006 = vst [vmem:[%s175 + $0x758] sm:$0xff] %v718
        %1007 = vst [vmem:[%s175 + $0x760] sm:$0xff] %v719
        %1008 = vst [vmem:[%s175 + $0x768] sm:$0xff] %v720
        %1009 = vst [vmem:[%s175 + $0x770] sm:$0xff] %v721
        %1010 = vst [vmem:[%s175 + $0x778] sm:$0xff] %v722
        %1011 = vst [vmem:[%s175 + $0x780] sm:$0xff] %v723
        %1012 = vst [vmem:[%s175 + $0x788] sm:$0xff] %v724
        %1013 = vst [vmem:[%s175 + $0x790] sm:$0xff] %v725
        %1014 = vst [vmem:[%s175 + $0x798] sm:$0xff] %v726
        %1015 = vst [vmem:[%s175 + $0x7a0] sm:$0xff] %v727
        %1016 = vst [vmem:[%s175 + $0x7a8] sm:$0xff] %v728
        %1017 = vst [vmem:[%s175 + $0x7b0] sm:$0xff] %v729
        %1018 = vst [vmem:[%s175 + $0x7b8] sm:$0xff] %v730
        %1019 = vst [vmem:[%s175 + $0x7c0] sm:$0xff] %v731
        %1020 = vst [vmem:[%s175 + $0x7c8] sm:$0xff] %v732
        %1021 = vst [vmem:[%s175 + $0x7d0] sm:$0xff] %v733
        %1022 = vst [vmem:[%s175 + $0x7d8] sm:$0xff] %v734
        %1023 = vst [vmem:[%s175 + $0x7e0] sm:$0xff] %v735
        %1024 = vst [vmem:[%s175 + $0x7e8] sm:$0xff] %v736
        %1025 = vst [vmem:[%s175 + $0x7f0] sm:$0xff] %v737
        %1026 = vst [vmem:[%s175 + $0x7f8] sm:$0xff] %v738
        %1027 = vst [vmem:[%s175 + $0x800] sm:$0xff] %v739
        %1028 = vst [vmem:[%s175 + $0x808] sm:$0xff] %v740
        %1029 = vst [vmem:[%s175 + $0x810] sm:$0xff] %v741
        %1030 = vst [vmem:[%s175 + $0x818] sm:$0xff] %v742
        %1031 = vst [vmem:[%s175 + $0x820] sm:$0xff] %v743
        %1032 = vst [vmem:[%s175 + $0x828] sm:$0xff] %v744
        %1033 = vst [vmem:[%s175 + $0x830] sm:$0xff] %v745
        %1034 = vst [vmem:[%s175 + $0x838] sm:$0xff] %v746
        %1035 = vst [vmem:[%s175 + $0x840] sm:$0xff] %v747
        %1036 = vst [vmem:[%s175 + $0x848] sm:$0xff] %v748
        %1037 = vst [vmem:[%s175 + $0x850] sm:$0xff] %v749
        %1038 = vst [vmem:[%s175 + $0x858] sm:$0xff] %v750
        %1039 = vst [vmem:[%s175 + $0x860] sm:$0xff] %v751
        %1040 = vst [vmem:[%s175 + $0x868] sm:$0xff] %v752
        %1041 = vst [vmem:[%s175 + $0x870] sm:$0xff] %v753
        %1042 = vst [vmem:[%s175 + $0x878] sm:$0xff] %v754
        %1043 = vst [vmem:[%s175 + $0x880] sm:$0xff] %v755
        %1044 = vst [vmem:[%s175 + $0x888] sm:$0xff] %v756
        %1045 = vst [vmem:[%s175 + $0x890] sm:$0xff] %v757
        %1046 = vst [vmem:[%s175 + $0x898] sm:$0xff] %v758
        %1047 = vst [vmem:[%s175 + $0x8a0] sm:$0xff] %v759
        %1048 = vst [vmem:[%s175 + $0x8a8] sm:$0xff] %v760
        %1049 = vst [vmem:[%s175 + $0x8b0] sm:$0xff] %v761
        %1050 = vst [vmem:[%s175 + $0x8b8] sm:$0xff] %v762
        %1051 = vst [vmem:[%s175 + $0x8c0] sm:$0xff] %v763
        %1052 = vst [vmem:[%s175 + $0x8c8] sm:$0xff] %v764
        %1053 = vst [vmem:[%s175 + $0x8d0] sm:$0xff] %v765
        %1054 = vst [vmem:[%s175 + $0x8d8] sm:$0xff] %v766
        %1055 = vst [vmem:[%s175 + $0x8e0] sm:$0xff] %v767
        %1056 = vst [vmem:[%s175 + $0x8e8] sm:$0xff] %v768
        %1057 = vst [vmem:[%s175 + $0x8f0] sm:$0xff] %v769
        %1058 = vst [vmem:[%s175 + $0x8f8] sm:$0xff] %v770
        %s1059 = sand.u32 %s75, 1
        %s1060 = scalar_lea.sflag [#allocation4], %s1059
        %s1061 = sand.u32 %s75, 1
        %s1062 = smul.addr %s1061, 2304
        %s1063 = scalar_lea.vmem [#allocation7], %s1062
        // Predicated region
        $region37: #{tpu_custom_call.1} parent=27 // pred_check
          %p1064 = pneg %p85
        $region38: #{tpu_custom_call.1} parent=27 // pred_check_branch
          %1066 = sbr.rel (%p1064) target = $region40
        $region39: #{tpu_custom_call.1} parent=27 // pred_region
          %s1067 = smul.u32 96, %s20
          %s1069 = ssub.s32 36864, 36864
          %1070 = vsyncadd %s1060, %s1069
          %s1071 = smul.addr %s1067, 3
          %s1072 = smul.addr %s1071, 128
          %s1073 = scalar_lea.hbm %s2, %s1072
          %s1074 = sshll.u32 %s1063, 4
          %s1075 = int_to_ptr.vmem [resolvable:$true] %s1074
          %1080 = dma.vmem_to_hbm [thread:$0]  %s1075, 36864, %s1073, %s1060, 384, 384, 24
        $region40: #{tpu_custom_call.1} parent=27 // pred_fallthru
          _
      $region28: #{tpu_custom_call.1} parent=5 // pred_fallthru
        _
      %p1081 = scmp.le.s32.totalorder 2, %s15
      // Predicated region
      $region41: #{tpu_custom_call.1} parent=5 // pred_check
        %p1082 = pneg %p1081
      $region42: #{tpu_custom_call.1} parent=5 // pred_check_branch
        %1084 = sbr.rel (%p1082) target = $region44
      $region43: #{tpu_custom_call.1} parent=5 // pred_region
        %s1085 = ssub.s32 %s15, 2
        // Predicated region
        $region45: #{tpu_custom_call.1} parent=43 // pred_check
          %p1086 = pneg %p91
        $region46: #{tpu_custom_call.1} parent=43 // pred_check_branch
          %1088 = sbr.rel (%p1086) target = $region48
        $region47: #{tpu_custom_call.1} parent=43 // pred_region
          %s1089 = sand.u32 %s76, 1
          %s1090 = scalar_lea.sflag [#allocation4], %s1089
          %s1091 = sand.u32 %s76, 1
          %s1092 = smul.addr %s1091, 2304
          %s1093 = scalar_lea.vmem [#allocation7], %s1092
          %1094 = dma.done %s1090, 36864
        $region48: #{tpu_custom_call.1} parent=43 // pred_fallthru
          _
      $region44: #{tpu_custom_call.1} parent=5 // pred_fallthru
        _
    $region6: #{tpu_custom_call.1} parent=1 // loop_footer
      %s19 = sadd.s32 1, %s15
    $region7: #{tpu_custom_call.1} parent=1 // loop_footer_branch
      %14 = sbr.rel target = $region3
    $region8: #{tpu_custom_call.1} parent=1 // loop_exit
      _
    %1095 = vsyncpa [#allocation3], 1
    %s1096 = scalar_lea.sflag [#allocation3], 1
    %1097 = vsyncpa %s1096, 1
    %1098 = vsyncpa [#allocation6], 1
    %1099 = vsyncpa [#allocation4], 1
    %s1100 = scalar_lea.sflag [#allocation4], 1
    %1101 = vsyncpa %s1100, 1

</llo_original>
